<compile_context>
chip_gen: v7x
topology: tpu7x:2x2x1
jax: 0.10.0
libtpu: 0.0.40
codegen_flags: <defaults>
</compile_context>

<pallas_src>
import functools
import math

import numpy as np
import jax
import jax.numpy as jnp
from jax.experimental import pallas as pl
from jax.experimental.pallas import tpu as pltpu


def _cutmix_kernel(idx_ref, cut_ref, xs_ref, xp_ref, xo_ref, *, width):
    """Width-split 'concat' for one (batch, sublane-tile) block.

    idx_ref : scalar-prefetch SMEM ref (B,) int32  -- used only by index_maps
    cut_ref : scalar-prefetch SMEM ref (1,) int32  -- runtime cut column
    xs_ref  : x[b]        block (1, tile_s, L)
    xp_ref  : x[idx[b]]   block (1, tile_s, L)   (gathered via index_map)
    xo_ref  : x_out[b]    block (1, tile_s, L)
    """
    del idx_ref  # consumed only by the BlockSpec index_maps
    lane_dim = xs_ref.shape[-1]
    # Single-row lane iota; L is a multiple of W, so (lane % W) is the original
    # image column.  `width` is a static Python int; `cut` is a runtime SMEM
    # scalar, so changing lam never retraces/recompiles the kernel.  The extra
    # VALU work is fully hidden under DMA (this kernel is purely memory-bound).
    lane = jax.lax.broadcasted_iota(jnp.int32, (1, 1, lane_dim), dimension=2)
    keep_self = (lane % width) < cut_ref[0]
    xo_ref[...] = jnp.where(keep_self, xs_ref[...], xp_ref[...])


def _dense_layout(C, H, W):
    """Pick (S, L) for the (B, S, L) reshape: L a multiple of 128 and of W."""
    k = 128 // math.gcd(W, 128)           # smallest k with k*W % 128 == 0
    if (C * H) % k == 0:
        return (C * H) // k, k * W        # fully lane/sublane-dense
    return C, H * W                        # fallback (still lane-dense-ish)


def _choose_tile_s(S, L, itemsize, target_bytes=2 << 20):
    """Largest sublane tile (multiple of 8 dividing S, or S itself) <= ~2 MiB."""
    if S * L * itemsize <= target_bytes:
        return S
    cands = [t for t in range(8, S, 8)
             if S % t == 0 and t * L * itemsize <= target_bytes]
    return max(cands) if cands else S


def cutmix_pallas(x, y, lam, idx):
    """x: (B, C, H, W) f32, y: (B, NC) f32, lam: traced/host f32 scalar,
    idx: (B,) int32 permutation.  Returns (x_mixed, y_mixed).  jit-safe."""
    B, C, H, W = x.shape
    lam = jnp.asarray(lam, jnp.float32)
    # Matches torch's int(lam * img_size): lam in (0,1) so trunc == floor.
    cut = (lam * W).astype(jnp.int32).reshape(1)
    idx = idx.astype(jnp.int32)

    S, L = _dense_layout(C, H, W)
    tile_s = _choose_tile_s(S, L, x.dtype.itemsize)
    x_flat = x.reshape(B, S, L)            # free row-major reshape

    grid = (B, S // tile_s)
    grid_spec = pltpu.PrefetchScalarGridSpec(
        num_scalar_prefetch=2,             # idx, cut
        grid=grid,
        in_specs=[
            # x[b]
            pl.BlockSpec((1, tile_s, L),
                         lambda b, s, idx_ref, cut_ref: (b, s, 0)),
            # x[idx[b]]  (batch gather via scalar-prefetch index map)
            pl.BlockSpec((1, tile_s, L),
                         lambda b, s, idx_ref, cut_ref: (idx_ref[b], s, 0)),
        ],
        out_specs=pl.BlockSpec((1, tile_s, L),
                               lambda b, s, idx_ref, cut_ref: (b, s, 0)),
    )

    x_out_flat = pl.pallas_call(
        functools.partial(_cutmix_kernel, width=W),
        out_shape=jax.ShapeDtypeStruct((B, S, L), x.dtype),
        grid_spec=grid_spec,
        compiler_params=pltpu.CompilerParams(
            dimension_semantics=("parallel", "parallel")),  # disjoint outputs
    )(idx, cut, x_flat, x_flat)

    x_out = x_out_flat.reshape(B, C, H, W)

    # Label mixing is a trivial (B, NC) elementwise op; plain jnp avoids tiny
    # padded DMAs inside the kernel and works with a traced lam.
    y_out = lam * y + (1.0 - lam) * y[idx]
    return x_out, y_out


def cutmix_ref(x, y, lam, idx):
    """Pure-JAX reference mirroring the PyTorch forward (same f32 cut calc)."""
    W = x.shape[-1]
    cut = int(np.float32(lam) * np.float32(W))
    x_out = jnp.concatenate([x[:, :, :, :cut], x[idx, :, :, cut:]], axis=-1)
    y_out = lam * y + (1.0 - lam) * y[idx]
    return x_out, y_out


if __name__ == "__main__":
    ALPHA = 8
    B, C, H, W, NC = 4, 4, 16, 16, 8

    key = jax.random.PRNGKey(0)
    kx, ky, kl, kp = jax.random.split(key, 4)

    x = jax.random.normal(kx, (B, C, H, W), dtype=jnp.float32)
    y = jax.random.normal(ky, (B, NC), dtype=jnp.float32)

    # The module's randomness (beta draw + permutation), made deterministic and
    # drawn outside the kernel.
    lam = float(jax.random.beta(kl, ALPHA, ALPHA))
    lam = max(lam, 1.0 - lam)
    idx = jax.random.permutation(kp, B).astype(jnp.int32)

    fn = jax.jit(cutmix_pallas)

    x_out, y_out = fn(x, y, jnp.float32(lam), idx)
    jax.block_until_ready((x_out, y_out))
    x_ref, y_ref = cutmix_ref(x, y, lam, idx)
    np.testing.assert_allclose(np.asarray(x_out), np.asarray(x_ref),
                               rtol=1e-6, atol=1e-6)
    np.testing.assert_allclose(np.asarray(y_out), np.asarray(y_ref),
                               rtol=1e-6, atol=1e-6)

    # A second lam value reuses the same compiled kernel (cut is a runtime
    # scalar operand, not a baked constant).
    lam2 = 0.8125
    x_out2, y_out2 = fn(x, y, jnp.float32(lam2), idx)
    jax.block_until_ready((x_out2, y_out2))
    x_ref2, y_ref2 = cutmix_ref(x, y, lam2, idx)
    np.testing.assert_allclose(np.asarray(x_out2), np.asarray(x_ref2),
                               rtol=1e-6, atol=1e-6)
    np.testing.assert_allclose(np.asarray(y_out2), np.asarray(y_ref2),
                               rtol=1e-6, atol=1e-6)

    print("KERNEL_OK")
</pallas_src>

<mosaic_0001>
module attributes {stable_mosaic.version = 11 : i64} {
  func.func @_cutmix_kernel(%arg0: i32, %arg1: i32, %arg2: memref<4xi32, #tpu.memory_space<smem>>, %arg3: memref<1xi32, #tpu.memory_space<smem>>, %arg4: memref<1x8x128xf32, #tpu.memory_space<vmem>>, %arg5: memref<1x8x128xf32, #tpu.memory_space<vmem>>, %arg6: memref<1x8x128xf32, #tpu.memory_space<vmem>>) attributes {dimension_semantics = [#tpu.dimension_semantics<parallel>, #tpu.dimension_semantics<parallel>], iteration_bounds = array<i64: 4, 1>, scalar_prefetch = 2 : i64, scratch_operands = 0 : i64, tpu.core_type = #tpu.core_type<tc>, window_params = [{transform_indices = @transform_0, window_bounds = array<i64: 1, 8, 128>}, {transform_indices = @transform_1, window_bounds = array<i64: 1, 8, 128>}, {transform_indices = @transform_2, window_bounds = array<i64: 1, 8, 128>}]} {
    %0 = tpu.iota {dimensions = array<i32: 2>} : vector<1x1x128xi32>
    %c16_i32 = arith.constant 16 : i32
    %c0_i32 = arith.constant 0 : i32
    %1 = arith.cmpi eq, %c16_i32, %c0_i32 : i32
    %c1_i32 = arith.constant 1 : i32
    %2 = arith.select %1, %c1_i32, %c16_i32 : i32
    %3 = vector.broadcast %2 : i32 to vector<1x1x128xi32>
    %4 = arith.remsi %0, %3 : vector<1x1x128xi32>
    %c0_i32_0 = arith.constant 0 : i32
    %5 = vector.broadcast %c0_i32_0 : i32 to vector<1x1x128xi32>
    %6 = arith.cmpi ne, %4, %5 : vector<1x1x128xi32>
    %c0_i32_1 = arith.constant 0 : i32
    %7 = vector.broadcast %c0_i32_1 : i32 to vector<1x1x128xi32>
    %8 = arith.cmpi slt, %4, %7 : vector<1x1x128xi32>
    %c0_i32_2 = arith.constant 0 : i32
    %9 = arith.cmpi slt, %2, %c0_i32_2 : i32
    %10 = vector.broadcast %9 : i1 to vector<1x1x128xi1>
    %11 = vector.broadcast %10 : vector<1x1x128xi1> to vector<1x1x128xi1>
    %12 = arith.xori %8, %11 : vector<1x1x128xi1>
    %13 = arith.andi %12, %6 : vector<1x1x128xi1>
    %14 = vector.broadcast %2 : i32 to vector<1x1x128xi32>
    %15 = arith.addi %4, %14 : vector<1x1x128xi32>
    %16 = arith.select %13, %15, %4 : vector<1x1x128xi1>, vector<1x1x128xi32>
    %c0 = arith.constant 0 : index
    %17 = memref.load %arg3[%c0] : memref<1xi32, #tpu.memory_space<smem>>
    %18 = vector.broadcast %17 : i32 to vector<1x1x128xi32>
    %19 = arith.cmpi slt, %16, %18 : vector<1x1x128xi32>
    %c0_3 = arith.constant 0 : index
    %c0_4 = arith.constant 0 : index
    %c0_5 = arith.constant 0 : index
    %20 = vector.load %arg4[%c0_3, %c0_4, %c0_5] : memref<1x8x128xf32, #tpu.memory_space<vmem>>, vector<1x8x128xf32>
    %c0_6 = arith.constant 0 : index
    %c0_7 = arith.constant 0 : index
    %c0_8 = arith.constant 0 : index
    %21 = vector.load %arg5[%c0_6, %c0_7, %c0_8] : memref<1x8x128xf32, #tpu.memory_space<vmem>>, vector<1x8x128xf32>
    %22 = vector.shape_cast %19 : vector<1x1x128xi1> to vector<1x1x128xi1>
    %23 = vector.broadcast %22 : vector<1x1x128xi1> to vector<1x8x128xi1>
    %24 = arith.select %23, %20, %21 : vector<1x8x128xi1>, vector<1x8x128xf32>
    %c0_9 = arith.constant 0 : index
    %c0_10 = arith.constant 0 : index
    %c0_11 = arith.constant 0 : index
    %25 = vector.load %arg6[%c0_9, %c0_10, %c0_11] : memref<1x8x128xf32, #tpu.memory_space<vmem>>, vector<1x8x128xf32>
    tpu.vector_store %arg6[%c0_9, %c0_10, %c0_11], %24 {strides = array<i32>} : memref<1x8x128xf32, #tpu.memory_space<vmem>>, vector<1x8x128xf32>,
    return
  }
  func.func @transform_0(%arg0: i32, %arg1: i32, %arg2: memref<4xi32, #tpu.memory_space<smem>>, %arg3: memref<1xi32, #tpu.memory_space<smem>>) -> (i32, i32, i32) {
    %c0_i32 = arith.constant 0 : i32
    %c0_i32_0 = arith.constant 0 : i32
    return %arg0, %arg1, %c0_i32 : i32, i32, i32
  }
  func.func @transform_1(%arg0: i32, %arg1: i32, %arg2: memref<4xi32, #tpu.memory_space<smem>>, %arg3: memref<1xi32, #tpu.memory_space<smem>>) -> (i32, i32, i32) {
    %0 = arith.index_cast %arg0 : i32 to index
    %1 = memref.load %arg2[%0] : memref<4xi32, #tpu.memory_space<smem>>
    %c0_i32 = arith.constant 0 : i32
    %c0_i32_0 = arith.constant 0 : i32
    return %1, %arg1, %c0_i32 : i32, i32, i32
  }
  func.func @transform_2(%arg0: i32, %arg1: i32, %arg2: memref<4xi32, #tpu.memory_space<smem>>, %arg3: memref<1xi32, #tpu.memory_space<smem>>) -> (i32, i32, i32) {
    %c0_i32 = arith.constant 0 : i32
    %c0_i32_0 = arith.constant 0 : i32
    return %arg0, %arg1, %c0_i32 : i32, i32, i32
  }
}

</mosaic_0001>

<llo_original>
// kernel: cutmix_pallas.1
$region0: #{cutmix_pallas.1}
  #allocation0 [shape = 'u32[]', space=smem, size = 0x4, offset = 0x4, fixed_abs, tag = 'smem constant byte address 0x4 - core index']
  #allocation1 [shape = 'u32[144,128]{1,0:T(1,128)}', space=vmem, size = 0x12000, scoped, tag = 'internal scratch']
  #allocation2 [shape = 's32[1]{0}', space=sflag, size = 0x4, scoped, tag = 'scoped memory for cutmix_pallas.1']
  #allocation3 [shape = 'u8[512]{0}', space=smem, size = 0x200, scoped, tag = 'prefetched SMEM operand 0']
  #allocation4 [shape = 's32[1]{0:T(128)S(6)}', space=smem, size = 0x200, scoped, tag = 'prefetched SMEM operand 1']
  %s0 = inlined_call_operand.vmem [shape: s32[4], index: 0, kind: input, shape index: {}]
  %s1 = inlined_call_operand.<no memory space> [shape: s32[1], index: 1, kind: input, shape index: {}]
  %s2 = inlined_call_operand.vmem [shape: f32[4,8,128], index: 2, kind: input, shape index: {}, may-alias: {2,3}]
  %s3 = inlined_call_operand.vmem [shape: f32[4,8,128], index: 3, kind: input, shape index: {}, may-alias: {2,3}]
  %s4 = inlined_call_operand.vmem [shape: f32[4,8,128], index: 4, kind: output, shape index: {}]
  %s5 = sld [smem:[#allocation0]]
  $region41: #{cutmix_pallas.1} parent=0
    _
  %s7 = ssub.s32 1, %s5
  %s8 = scalar_select 0, %s7, %s5
  %s9 = sshll.u32 %s0, 4
  %s10 = int_to_ptr.vmem [resolvable:$true] %s9
  %12 = dma.vmem_to_smem %s10, 16, [#allocation3], [#allocation2]
  %13 = sst [smem:[#allocation4]] %s1
  %14 = dma.done [#allocation2], 16
  %15 = sfence
  loop: start=0, step=1, limit=6
  $region2: #{cutmix_pallas.1} parent=0 // loop_pre_header
    _
  $region3: #{cutmix_pallas.1} parent=0 // loop_header
    %s17 = sphi 0, %s21
    %p18 = scmp.ge.s32.totalorder %s17, 6
    %s24 = sphi 0, %s36
    %s25 = sphi 0, %s32
    %s26 = sphi 0, %s24
    %s27 = sphi 0, %s25
    %s28 = sphi 0, %s26
    %s29 = sphi 0, %s27
    %s41 = sphi 0, %s43
    %s44 = sphi 0, %s41
    %s45 = sphi 0, %s44
    %s61 = sphi 0, %s45
    %s71 = sphi 0, %s73
    %s74 = sphi 0, %s71
    %s75 = sphi 0, %s74
    %s91 = sphi 0, %s75
    %s99 = sphi 0, %s101
    %s102 = sphi 0, %s99
    %s103 = sphi 0, %s102
    %s119 = sphi 0, %s103
  $region4: #{cutmix_pallas.1} parent=0 // loop_header_branch
    %20 = sbr.rel (%p18) target = $region8
  $region5: #{cutmix_pallas.1} parent=0 // loop_body
    %s22 = ssub.s32 %s17, 1
    %s23 = ssub.s32 %s17, 2
    %s30 = sadd.s32 1, %s25
    %p31 = scmp.ge.s32.totalorder %s30, 1
    %s32 = scalar_select %p31, 0, %s30
    %s33 = sadd.s32 1, %s24
    %s34 = scalar_select %p31, %s33, %s24
    %p35 = scmp.ge.s32.totalorder %s34, 4
    %s36 = scalar_select %p35, 0, %s34
    %s37 = ssub.s32 %s24, %s36
    %s38 = ssub.s32 %s25, %s32
    %s39 = sor.u32 %s37, %s38
    %p40 = scmp.eq.s32.totalorder %s39, 0
    %s42 = sadd.s32 %s41, 1
    %s43 = scalar_select %p40, %s41, %s42
    %p46 = pneg %p40
    %p47 = scmp.eq.s32.totalorder %s17, 3
    %p48 = por %p46, %p47
    %p49 = scmp.ne.s32.totalorder %s41, %s44
    %p50 = scmp.eq.s32.totalorder %s17, 0
    %p51 = por %p49, %p50
    %p52 = scmp.ne.s32.totalorder %s41, %s44
    %p53 = scmp.eq.s32.totalorder %s22, 3
    %p54 = por %p52, %p53
    %p55 = scmp.ne.s32.totalorder %s44, %s45
    %p56 = scmp.eq.s32.totalorder %s22, 0
    %p57 = por %p55, %p56
    %p58 = scmp.ne.s32.totalorder %s44, %s45
    %p59 = scmp.eq.s32.totalorder %s23, 3
    %p60 = por %p58, %p59
    %p62 = scmp.ne.s32.totalorder %s45, %s61
    %p63 = scmp.eq.s32.totalorder %s23, 0
    %p64 = por %p62, %p63
    %s65 = sld [smem:[#allocation3 + %s24]]
    %s66 = sld [smem:[#allocation3 + %s36]]
    %s67 = ssub.s32 %s65, %s66
    %s68 = ssub.s32 %s25, %s32
    %s69 = sor.u32 %s67, %s68
    %p70 = scmp.eq.s32.totalorder %s69, 0
    %s72 = sadd.s32 %s71, 1
    %s73 = scalar_select %p70, %s71, %s72
    %p76 = pneg %p70
    %p77 = scmp.eq.s32.totalorder %s17, 3
    %p78 = por %p76, %p77
    %p79 = scmp.ne.s32.totalorder %s71, %s74
    %p80 = scmp.eq.s32.totalorder %s17, 0
    %p81 = por %p79, %p80
    %p82 = scmp.ne.s32.totalorder %s71, %s74
    %p83 = scmp.eq.s32.totalorder %s22, 3
    %p84 = por %p82, %p83
    %p85 = scmp.ne.s32.totalorder %s74, %s75
    %p86 = scmp.eq.s32.totalorder %s22, 0
    %p87 = por %p85, %p86
    %p88 = scmp.ne.s32.totalorder %s74, %s75
    %p89 = scmp.eq.s32.totalorder %s23, 3
    %p90 = por %p88, %p89
    %p92 = scmp.ne.s32.totalorder %s75, %s91
    %p93 = scmp.eq.s32.totalorder %s23, 0
    %p94 = por %p92, %p93
    %s95 = ssub.s32 %s24, %s36
    %s96 = ssub.s32 %s25, %s32
    %s97 = sor.u32 %s95, %s96
    %p98 = scmp.eq.s32.totalorder %s97, 0
    %s100 = sadd.s32 %s99, 1
    %s101 = scalar_select %p98, %s99, %s100
    %p104 = pneg %p98
    %p105 = scmp.eq.s32.totalorder %s17, 3
    %p106 = por %p104, %p105
    %p107 = scmp.ne.s32.totalorder %s99, %s102
    %p108 = scmp.eq.s32.totalorder %s17, 0
    %p109 = por %p107, %p108
    %p110 = scmp.ne.s32.totalorder %s99, %s102
    %p111 = scmp.eq.s32.totalorder %s22, 3
    %p112 = por %p110, %p111
    %p113 = scmp.ne.s32.totalorder %s102, %s103
    %p114 = scmp.eq.s32.totalorder %s22, 0
    %p115 = por %p113, %p114
    %p116 = scmp.ne.s32.totalorder %s102, %s103
    %p117 = scmp.eq.s32.totalorder %s23, 3
    %p118 = por %p116, %p117
    %p120 = scmp.ne.s32.totalorder %s103, %s119
    %p121 = scmp.eq.s32.totalorder %s23, 0
    %p122 = por %p120, %p121
    %p123 = scmp.le.s32.totalorder 1, %s17
    %p124 = scmp.lt.s32.totalorder %s17, 5
    %p125 = pnand %p123, %p124
    %p126 = pneg %p125
    // Predicated region
    $region9: #{cutmix_pallas.1} parent=5 // pred_check
      _
    $region10: #{cutmix_pallas.1} parent=5 // pred_check_branch
      %128 = sbr.rel (%p125) target = $region12
    $region11: #{cutmix_pallas.1} parent=5 // pred_region
      %s129 = ssub.s32 %s17, 1
    $region12: #{cutmix_pallas.1} parent=5 // pred_fallthru
      _
    %p130 = scmp.lt.s32.totalorder %s17, 4
    // Predicated region
    $region13: #{cutmix_pallas.1} parent=5 // pred_check
      %p131 = pneg %p130
    $region14: #{cutmix_pallas.1} parent=5 // pred_check_branch
      %133 = sbr.rel (%p131) target = $region16
    $region15: #{cutmix_pallas.1} parent=5 // pred_region
      // Predicated region
      $region17: #{cutmix_pallas.1} parent=15 // pred_check
        %p134 = pneg %p51
      $region18: #{cutmix_pallas.1} parent=15 // pred_check_branch
        %136 = sbr.rel (%p134) target = $region20
      $region19: #{cutmix_pallas.1} parent=15 // pred_region
        %p137 = scmp.lt.s32.totalorder %s24, 3
        %s138 = scalar_select %p137, %s24, 3
        %p139 = scmp.lt.s32.totalorder %s25, 0
        %s140 = scalar_select %p139, %s25, 0
        %s141 = sadd.s32 %s140, %s138
        %s142 = smul.addr %s141, 8
        %s143 = scalar_lea.vmem %s2, %s142
      $region20: #{cutmix_pallas.1} parent=15 // pred_fallthru
        _
      // Predicated region
      $region21: #{cutmix_pallas.1} parent=15 // pred_check
        %p144 = pneg %p81
      $region22: #{cutmix_pallas.1} parent=15 // pred_check_branch
        %146 = sbr.rel (%p144) target = $region24
      $region23: #{cutmix_pallas.1} parent=15 // pred_region
        %s147 = sld [smem:[#allocation3 + %s24]]
        %p148 = scmp.lt.s32.totalorder %s147, 3
        %s149 = scalar_select %p148, %s147, 3
        %p150 = scmp.lt.s32.totalorder %s25, 0
        %s151 = scalar_select %p150, %s25, 0
        %s152 = sadd.s32 %s151, %s149
        %s153 = smul.addr %s152, 8
        %s154 = scalar_lea.vmem %s3, %s153
        %s155 = sld [smem:[#allocation3 + %s24]]
      $region24: #{cutmix_pallas.1} parent=15 // pred_fallthru
        _
    $region16: #{cutmix_pallas.1} parent=5 // pred_fallthru
      _
    %p156 = scmp.le.s32.totalorder 1, %s17
    %p157 = scmp.lt.s32.totalorder %s17, 5
    %p158 = pnand %p156, %p157
    %p159 = pneg %p158
    // Predicated region
    $region25: #{cutmix_pallas.1} parent=5 // pred_check
      _
    $region26: #{cutmix_pallas.1} parent=5 // pred_check_branch
      %161 = sbr.rel (%p158) target = $region28
    $region27: #{cutmix_pallas.1} parent=5 // pred_region
      %s162 = ssub.s32 %s17, 1
      %p163 = scmp.lt.s32.totalorder %s26, 3
      %s164 = scalar_select %p163, %s26, 3
      %p165 = scmp.lt.s32.totalorder %s27, 0
      %s166 = scalar_select %p165, %s27, 0
      %s167 = sadd.s32 %s166, %s164
      %s168 = smul.addr %s167, 8
      %s169 = scalar_lea.vmem %s2, %s168
      %p170 = pneg %p57
      %p171 = pneg %p54
      %s172 = sld [smem:[#allocation3 + %s26]]
      %p173 = scmp.lt.s32.totalorder %s172, 3
      %s174 = scalar_select %p173, %s172, 3
      %p175 = scmp.lt.s32.totalorder %s27, 0
      %s176 = scalar_select %p175, %s27, 0
      %s177 = sadd.s32 %s176, %s174
      %s178 = smul.addr %s177, 8
      %s179 = scalar_lea.vmem %s3, %s178
      %p180 = pneg %p87
      %p181 = pneg %p84
      %p182 = pneg %p115
      %p183 = pneg %p112
      %p184 = scmp.lt.s32.totalorder %s26, 3
      %s185 = scalar_select %p184, %s26, 3
      %p186 = scmp.lt.s32.totalorder %s27, 0
      %s187 = scalar_select %p186, %s27, 0
      %s188 = sadd.s32 %s187, %s185
      %s189 = smul.addr %s188, 8
      %s190 = scalar_lea.vmem %s4, %s189
      %p191 = scmp.lt.s32.totalorder %s26, 3
      %s192 = scalar_select %p191, %s26, 3
      %p193 = scmp.lt.s32.totalorder %s27, 0
      %s194 = scalar_select %p193, %s27, 0
      %s195 = sadd.s32 %s194, %s192
      %s196 = smul.addr %s195, 8
      %s197 = scalar_lea.vmem %s2, %s196
      %s198 = sld [smem:[#allocation3 + %s26]]
      %p199 = scmp.lt.s32.totalorder %s198, 3
      %s200 = scalar_select %p199, %s198, 3
      %p201 = scmp.lt.s32.totalorder %s27, 0
      %s202 = scalar_select %p201, %s27, 0
      %s203 = sadd.s32 %s202, %s200
      %s204 = smul.addr %s203, 8
      %s205 = scalar_lea.vmem %s3, %s204
      %s206 = sld [smem:[#allocation3 + %s26]]
      %p207 = scmp.lt.s32.totalorder %s26, 3
      %s208 = scalar_select %p207, %s26, 3
      %p209 = scmp.lt.s32.totalorder %s27, 0
      %s210 = scalar_select %p209, %s27, 0
      %s211 = sadd.s32 %s210, %s208
      %s212 = smul.addr %s211, 8
      %s213 = scalar_lea.vmem %s4, %s212
      %v214 = vlaneseq
      %v215 = vand.u32 %v214, 127
      %vm216 = vcmp.lt.s32.totalorder %v215, 0
      %v217 = vsub.s32 0, %v215
      %v218 = vsel %vm216, %v217, %v215
      %v219 = vshrl.u32 %v218, 4
      %v220 = vand.u32 %v218, 15
      %v221 = vsub.s32 0, %v220
      %v222 = vsel %vm216, %v221, %v220
      %vm223 = vcmp.ne.s32.totalorder %v222, 0
      %vm224 = vcmp.lt.s32.totalorder %v222, 0
      %vm225 = vmand %vm224, %vm223
      %v226 = vadd.s32 %v222, 16
      %v227 = vsel %vm225, %v226, %v222
      %s228 = sld [smem:[#allocation4]]
      %v229 = vstv %s228
      %vm230 = vcmp.lt.s32.totalorder %v227, %v229
      %v231 = vld [vmem:[%s197] sm:$0xff]
      %v232 = vld [vmem:[%s205] sm:$0xff]
      %v233 = vsel %vm230, 1, 0
      %vm234 = vcmp.eq.s32.totalorder %v233, 1
      %v235 = vsel %vm234, %v231, %v232
      %236 = vst [vmem:[%s213] sm:$0xff] %v235
      %p237 = scmp.lt.s32.totalorder %s26, 3
      %s238 = scalar_select %p237, %s26, 3
      %p239 = scmp.lt.s32.totalorder %s27, 0
      %s240 = scalar_select %p239, %s27, 0
      %s241 = sadd.s32 %s240, %s238
      %s242 = smul.addr %s241, 8
      %s243 = scalar_lea.vmem %s4, %s242
      // Predicated region
      $region29: #{cutmix_pallas.1} parent=27 // pred_check
        %p244 = pneg %p112
      $region30: #{cutmix_pallas.1} parent=27 // pred_check_branch
        %246 = sbr.rel (%p244) target = $region32
      $region31: #{cutmix_pallas.1} parent=27 // pred_region
        _
      $region32: #{cutmix_pallas.1} parent=27 // pred_fallthru
        _
    $region28: #{cutmix_pallas.1} parent=5 // pred_fallthru
      _
    %p247 = scmp.le.s32.totalorder 2, %s17
    // Predicated region
    $region33: #{cutmix_pallas.1} parent=5 // pred_check
      %p248 = pneg %p247
    $region34: #{cutmix_pallas.1} parent=5 // pred_check_branch
      %250 = sbr.rel (%p248) target = $region36
    $region35: #{cutmix_pallas.1} parent=5 // pred_region
      %s251 = ssub.s32 %s17, 2
      // Predicated region
      $region37: #{cutmix_pallas.1} parent=35 // pred_check
        %p252 = pneg %p118
      $region38: #{cutmix_pallas.1} parent=35 // pred_check_branch
        %254 = sbr.rel (%p252) target = $region40
      $region39: #{cutmix_pallas.1} parent=35 // pred_region
        %p255 = scmp.lt.s32.totalorder %s28, 3
        %s256 = scalar_select %p255, %s28, 3
        %p257 = scmp.lt.s32.totalorder %s29, 0
        %s258 = scalar_select %p257, %s29, 0
        %s259 = sadd.s32 %s258, %s256
        %s260 = smul.addr %s259, 8
        %s261 = scalar_lea.vmem %s4, %s260
      $region40: #{cutmix_pallas.1} parent=35 // pred_fallthru
        _
    $region36: #{cutmix_pallas.1} parent=5 // pred_fallthru
      _
  $region6: #{cutmix_pallas.1} parent=0 // loop_footer
    %s21 = sadd.s32 1, %s17
  $region7: #{cutmix_pallas.1} parent=0 // loop_footer_branch
    %16 = sbr.rel target = $region3
  $region8: #{cutmix_pallas.1} parent=0 // loop_exit
    _

</llo_original>
